<compile_context>
chip_gen: v5e
topology: v5e:2x2
jax: 0.10.0
libtpu: 0.0.40
codegen_flags: <defaults>
</compile_context>

<pallas_src>
import jax
import jax.numpy as jnp
from jax.experimental import pallas as pl
from jax.experimental.pallas import tpu as pltpu


def _make_attention_kernel(TB, S, H, bf16_elementwise):
    def kernel(hid_ref, enc_ref, wh_ref, we_ref, b_ref, v_ref, out_ref):
        # MXU projections: bf16 operands, f32 accumulation.
        hid_proj = jnp.dot(hid_ref[...], wh_ref[...],
                           preferred_element_type=jnp.float32)            # (TB, H)
        enc_proj = jnp.dot(enc_ref[...], we_ref[...],
                           preferred_element_type=jnp.float32)            # (TB*S, H)

        # Linear(cat(h, e)) == h @ W_h + e @ W_e + b.
        hid_b = hid_proj + b_ref[...]                                     # (TB, H)
        # Value-level reshape only (the DMA'd block is already flat); a no-op relayout
        # when S % 8 == 0.
        pre = enc_proj.reshape(TB, S, H) + hid_b[:, None, :]              # (TB, S, H) f32

        if bf16_elementwise:
            # v6e / v7x: bf16 EUP tanh + bf16 VPU multiply; reduction stays f32.
            energy = jnp.tanh(pre.astype(jnp.bfloat16))                   # (TB, S, H) bf16
            prod = energy * v_ref[...].astype(jnp.bfloat16)[None, :, :]
            scores = jnp.sum(prod.astype(jnp.float32), axis=-1)           # (TB, S) f32
        else:
            # v5e: no bf16 VPU/EUP -> keep elementwise math in f32.
            energy = jnp.tanh(pre)                                        # (TB, S, H) f32
            scores = jnp.sum(energy * v_ref[...][None, :, :], axis=-1)    # (TB, S) f32

        # Numerically-stable softmax over src_len (f32); divide on the EUP.
        m = jnp.max(scores, axis=-1, keepdims=True)
        e = jnp.exp(scores - m)
        denom = jnp.sum(e, axis=-1, keepdims=True)
        probs = e * pl.reciprocal(denom, approx=True)                     # (TB, S)

        # Lane-dense store: one (1, TB*S) row per grid step.
        out_ref[...] = probs.reshape(1, TB * S)

    return kernel


def _vmem_plan_bytes(TB, S, H, bf16_elementwise):
    """Per-grid-step VMEM footprint: double-buffered blocks + f32 intermediates."""
    energy_bytes = 2 if bf16_elementwise else 4
    per_row = (S * H * (2 * 2            # enc bf16 block, double-buffered
                        + 4              # f32 enc_proj intermediate
                        + energy_bytes)  # pre/energy intermediate
               + S * 4 * 2               # f32 output block, double-buffered
               + H * (2 * 2 + 4))        # hidden bf16 block (dbuf) + f32 hid_proj
    fixed = 2 * (H * H * 2) * 2 + 2 * (H * 4) * 2   # W_h/W_e + bias/v (double-buffered)
    return TB * per_row + fixed, per_row, fixed


def _choose_batch_tile(B, S, H, *, num_cores, vmem_budget_bytes, bf16_elementwise):
    _, per_row, fixed = _vmem_plan_bytes(1, S, H, bf16_elementwise)
    max_tb = max(1, (vmem_budget_bytes - fixed) // per_row)
    if num_cores > 1 and B % (8 * num_cores) == 0:
        # v7x: keep a core-balanced (multiple of num_cores) number of grid steps.
        max_tb = min(max_tb, B // num_cores)
    if B <= max_tb:
        return B                               # whole batch in one full-extent tile

    def ok(tb, balanced):
        if tb <= 0 or tb > max_tb or B % tb != 0:
            return False
        if balanced and num_cores > 1 and (B // tb) % num_cores != 0:
            return False
        return True

    # Prefer sublane-aligned (multiple-of-8) exact divisors of B; on multi-TC chips
    # additionally prefer a tile count that splits evenly across cores.
    for balanced in (True, False):
        for tb in range((int(max_tb) // 8) * 8, 0, -8):
            if ok(tb, balanced):
                return tb
    # No aligned divisor fits the budget: fall back to the largest exact divisor
    # (may take masked sublane paths, still correct).
    for tb in range(int(max_tb), 0, -1):
        if B % tb == 0:
            return tb
    return 1


def _tpu_config():
    """Generation-aware plan: TensorCores/chip, VMEM tiling budget, vmem_limit ceiling,
    and whether bf16 elementwise math (tanh) is profitable."""
    kind = ""
    try:
        dev = jax.devices()[0]
        if dev.platform == "tpu":
            kind = dev.device_kind.lower()
    except Exception:
        pass
    if "v7" in kind or "7x" in kind:
        # v7x: 64 MiB VMEM / TC, 2 TCs / chip, bf16 EUP -> conservative VMEM plan.
        return dict(num_cores=2, vmem_budget=36 << 20, vmem_ceiling=48 << 20,
                    bf16_elementwise=True)
    if "v6" in kind:
        # v6e: 128 MiB VMEM, 1 TC, bf16 VPU/EUP -> large tiles + bf16 tanh.
        return dict(num_cores=1, vmem_budget=64 << 20, vmem_ceiling=100 << 20,
                    bf16_elementwise=True)
    if "v5" in kind or "v4" in kind:
        # v5e: 128 MiB VMEM, 1 TC, no bf16 VPU/EUP -> large tiles, f32 elementwise.
        return dict(num_cores=1, vmem_budget=64 << 20, vmem_ceiling=100 << 20,
                    bf16_elementwise=False)
    # Unknown chip: conservative plan, f32 elementwise, default scoped VMEM limit.
    return dict(num_cores=1, vmem_budget=24 << 20, vmem_ceiling=None,
                bf16_elementwise=False)


def attention_forward(hidden, encoder_outputs, attn_weight_t, attn_bias, v,
                      *, batch_tile=None):
    """hidden: (B,H), encoder_outputs: (B,S,H), attn_weight_t: (2H,H) (W.T, so that
    x @ attn_weight_t == Linear(x)), attn_bias: (H,), v: (H,) -> (B,S) attention."""
    B, S, H = encoder_outputs.shape
    assert hidden.shape == (B, H)
    assert attn_weight_t.shape == (2 * H, H)

    cfg = _tpu_config()

    # Split Linear(2H,H): Linear(cat(h, e)) == h @ W_h + e @ W_e + b.
    w_h = attn_weight_t[:H, :].astype(jnp.bfloat16)
    w_e = attn_weight_t[H:, :].astype(jnp.bfloat16)

    # bf16 MXU operands; encoder_outputs pre-flattened so the DMA'd block / MXU LHS is
    # a clean 2-D (TB*S, H) tile (no ref-level reshape inside the kernel).
    hid_bf = hidden.astype(jnp.bfloat16)
    enc_bf = encoder_outputs.reshape(B * S, H).astype(jnp.bfloat16)
    bias2d = attn_bias.reshape(1, H).astype(jnp.float32)
    v2d = v.reshape(1, H).astype(jnp.float32)
    # TODO(synk): for production H not a multiple of 128 the lane dim is under-filled;
    # we accept that cost here (zero-padding H would not reduce the vreg count).

    if batch_tile is None:
        batch_tile = _choose_batch_tile(
            B, S, H, num_cores=cfg["num_cores"],
            vmem_budget_bytes=cfg["vmem_budget"],
            bf16_elementwise=cfg["bf16_elementwise"])
    TB = batch_tile
    assert B % TB == 0, "batch_tile must divide B"
    num_tiles = B // TB

    planned, _, _ = _vmem_plan_bytes(TB, S, H, cfg["bf16_elementwise"])
    cp_kwargs = dict(dimension_semantics=("parallel",))
    if cfg["vmem_ceiling"] is not None:
        cp_kwargs["vmem_limit_bytes"] = int(
            min(cfg["vmem_ceiling"], max(32 << 20, planned * 3 // 2 + (2 << 20))))
    compiler_params = pltpu.CompilerParams(**cp_kwargs)

    kernel = _make_attention_kernel(TB, S, H, cfg["bf16_elementwise"])

    def build(single_buffer_weights):
        wkw = {"pipeline_mode": pl.Buffered(1)} if single_buffer_weights else {}
        return pl.pallas_call(
            kernel,
            out_shape=jax.ShapeDtypeStruct((num_tiles, TB * S), jnp.float32),
            grid_spec=pltpu.PrefetchScalarGridSpec(
                num_scalar_prefetch=0,
                grid=(num_tiles,),
                in_specs=[
                    pl.BlockSpec((TB, H), lambda i: (i, 0)),          # hidden tile
                    pl.BlockSpec((TB * S, H), lambda i: (i, 0)),      # flat encoder tile
                    pl.BlockSpec((H, H), lambda i: (0, 0), **wkw),    # W_h (resident)
                    pl.BlockSpec((H, H), lambda i: (0, 0), **wkw),    # W_e (resident)
                    pl.BlockSpec((1, H), lambda i: (0, 0)),           # bias
                    pl.BlockSpec((1, H), lambda i: (0, 0)),           # v
                ],
                out_specs=pl.BlockSpec((1, TB * S), lambda i: (i, 0)),  # lane-dense slab
            ),
            compiler_params=compiler_params,
        )

    args = (hid_bf, enc_bf, w_h, w_e, bias2d, v2d)
    if num_tiles > 1:
        # Grid-invariant weight blocks: single-buffer them to free VMEM for a larger TB
        # (matters for large H on v7x).  Fall back to default buffering if rejected.
        try:
            out_flat = jax.block_until_ready(build(True)(*args))
        except Exception:
            out_flat = build(False)(*args)
    else:
        out_flat = build(False)(*args)
    return out_flat.reshape(B, S)


def attention_reference(hidden, encoder_outputs, attn_weight_t, attn_bias, v):
    """Pure-JAX f32 reference mirroring the PyTorch forward."""
    B, S, H = encoder_outputs.shape
    hid_rep = jnp.broadcast_to(hidden[:, None, :], (B, S, H))
    cat = jnp.concatenate([hid_rep, encoder_outputs], axis=2)             # (B, S, 2H)
    energy = jnp.tanh(cat @ attn_weight_t + attn_bias)                    # (B, S, H)
    scores = jnp.einsum("bsh,h->bs", energy, v)                           # (B, S)
    return jax.nn.softmax(scores, axis=1)


if __name__ == "__main__":
    B, S, H = 4, 8, 32

    key = jax.random.PRNGKey(0)
    k1, k2, k3, k4, k5 = jax.random.split(key, 5)

    # nn.Linear(2H, H) stores weight as (out, in); transpose once for x @ W.
    attn_weight = jax.random.normal(k1, (H, 2 * H), jnp.float32) * 0.1
    attn_weight_t = attn_weight.T                                         # (2H, H)
    attn_bias = jax.random.normal(k2, (H,), jnp.float32) * 0.1
    v_param = jax.random.uniform(k3, (H,), jnp.float32)                   # torch.rand

    hidden = jax.random.normal(k4, (B, H), jnp.float32)
    encoder_outputs = jax.random.normal(k5, (B, S, H), jnp.float32)

    out = attention_forward(hidden, encoder_outputs, attn_weight_t, attn_bias, v_param)
    out = jax.block_until_ready(out)

    ref = attention_reference(hidden, encoder_outputs, attn_weight_t, attn_bias, v_param)
    assert out.shape == (B, S)
    # bf16 MXU operands (+ bf16 tanh on v6e/v7x) and approx reciprocal -> loose tolerance.
    assert jnp.allclose(out, ref, atol=3e-2, rtol=3e-2), "mismatch vs reference"
    assert jnp.allclose(jnp.sum(out, axis=1), 1.0, atol=5e-3), "softmax rows must sum to 1"

    print("KERNEL_OK")
</pallas_src>

<mosaic_0001>
module attributes {stable_mosaic.version = 11 : i64} {
  func.func @kernel(%arg0: i32, %arg1: memref<4x32xbf16, #tpu.memory_space<vmem>>, %arg2: memref<32x32xbf16, #tpu.memory_space<vmem>>, %arg3: memref<32x32xbf16, #tpu.memory_space<vmem>>, %arg4: memref<32x32xbf16, #tpu.memory_space<vmem>>, %arg5: memref<1x32xf32, #tpu.memory_space<vmem>>, %arg6: memref<1x32xf32, #tpu.memory_space<vmem>>, %arg7: memref<1x32xf32, #tpu.memory_space<vmem>>) attributes {dimension_semantics = [#tpu.dimension_semantics<parallel>], iteration_bounds = array<i64: 1>, scalar_prefetch = 0 : i64, scratch_operands = 0 : i64, tpu.core_type = #tpu.core_type<tc>, window_params = [{transform_indices = @transform_0, window_bounds = array<i64: 4, 32>}, {transform_indices = @transform_1, window_bounds = array<i64: 32, 32>}, {pipeline_mode = #tpu.pipeline_mode<synchronous>, transform_indices = @transform_2, window_bounds = array<i64: 32, 32>}, {pipeline_mode = #tpu.pipeline_mode<synchronous>, transform_indices = @transform_3, window_bounds = array<i64: 32, 32>}, {pipeline_mode = #tpu.pipeline_mode<synchronous>, transform_indices = @transform_4, window_bounds = array<i64: 1, 32>}, {pipeline_mode = #tpu.pipeline_mode<synchronous>, transform_indices = @transform_5, window_bounds = array<i64: 1, 32>}, {transform_indices = @transform_6, window_bounds = array<i64: 1, 32>}]} {
    %c0 = arith.constant 0 : index
    %c0_0 = arith.constant 0 : index
    %0 = vector.load %arg1[%c0, %c0_0] : memref<4x32xbf16, #tpu.memory_space<vmem>>, vector<4x32xbf16>
    %c0_1 = arith.constant 0 : index
    %c0_2 = arith.constant 0 : index
    %1 = vector.load %arg3[%c0_1, %c0_2] : memref<32x32xbf16, #tpu.memory_space<vmem>>, vector<32x32xbf16>
    %cst = arith.constant dense<0.000000e+00> : vector<4x32xf32>
    %2 = tpu.matmul %0, %1, %cst {dimension_numbers = #tpu.dot_dimension_numbers<[1], [0], [0], [1], [0, 0, 1, 1], [], []>} : vector<4x32xbf16>, vector<32x32xbf16>, vector<4x32xf32> -> vector<4x32xf32>
    %c0_3 = arith.constant 0 : index
    %c0_4 = arith.constant 0 : index
    %3 = vector.load %arg2[%c0_3, %c0_4] : memref<32x32xbf16, #tpu.memory_space<vmem>>, vector<32x32xbf16>
    %c0_5 = arith.constant 0 : index
    %c0_6 = arith.constant 0 : index
    %4 = vector.load %arg4[%c0_5, %c0_6] : memref<32x32xbf16, #tpu.memory_space<vmem>>, vector<32x32xbf16>
    %cst_7 = arith.constant dense<0.000000e+00> : vector<32x32xf32>
    %5 = tpu.matmul %3, %4, %cst_7 {dimension_numbers = #tpu.dot_dimension_numbers<[1], [0], [0], [1], [0, 0, 1, 1], [], []>} : vector<32x32xbf16>, vector<32x32xbf16>, vector<32x32xf32> -> vector<32x32xf32>
    %c0_8 = arith.constant 0 : index
    %c0_9 = arith.constant 0 : index
    %6 = vector.load %arg5[%c0_8, %c0_9] : memref<1x32xf32, #tpu.memory_space<vmem>>, vector<1x32xf32>
    %7 = vector.broadcast %6 : vector<1x32xf32> to vector<4x32xf32>
    %8 = arith.addf %2, %7 : vector<4x32xf32>
    %9 = vector.shape_cast %5 : vector<32x32xf32> to vector<4x8x32xf32>
    %10 = vector.shape_cast %8 : vector<4x32xf32> to vector<4x1x32xf32>
    %11 = vector.broadcast %10 : vector<4x1x32xf32> to vector<4x8x32xf32>
    %12 = arith.addf %9, %11 : vector<4x8x32xf32>
    %13 = math.tanh %12 : vector<4x8x32xf32>
    %c0_10 = arith.constant 0 : index
    %c0_11 = arith.constant 0 : index
    %14 = vector.load %arg6[%c0_10, %c0_11] : memref<1x32xf32, #tpu.memory_space<vmem>>, vector<1x32xf32>
    %15 = vector.shape_cast %14 : vector<1x32xf32> to vector<1x1x32xf32>
    %16 = vector.broadcast %15 : vector<1x1x32xf32> to vector<4x8x32xf32>
    %17 = arith.mulf %13, %16 : vector<4x8x32xf32>
    %cst_12 = arith.constant dense<0.000000e+00> : vector<4x8xf32>
    %18 = vector.multi_reduction <add>, %17, %cst_12 [2] : vector<4x8x32xf32> to vector<4x8xf32>
    %cst_13 = arith.constant dense<0xFF800000> : vector<4xf32>
    %19 = vector.multi_reduction <maximumf>, %18, %cst_13 [1] : vector<4x8xf32> to vector<4xf32>
    %20 = vector.shape_cast %19 : vector<4xf32> to vector<4x1xf32>
    %21 = vector.broadcast %20 : vector<4x1xf32> to vector<4x8xf32>
    %22 = arith.subf %18, %21 : vector<4x8xf32>
    %23 = math.exp %22 : vector<4x8xf32>
    %cst_14 = arith.constant dense<0.000000e+00> : vector<4xf32>
    %24 = vector.multi_reduction <add>, %23, %cst_14 [1] : vector<4x8xf32> to vector<4xf32>
    %25 = vector.shape_cast %24 : vector<4xf32> to vector<4x1xf32>
    %26 = tpu.reciprocal %25 {approx = true} : vector<4x1xf32> -> vector<4x1xf32>
    %27 = vector.broadcast %26 : vector<4x1xf32> to vector<4x8xf32>
    %28 = arith.mulf %23, %27 : vector<4x8xf32>
    %29 = vector.shape_cast %28 : vector<4x8xf32> to vector<1x32xf32>
    %c0_15 = arith.constant 0 : index
    %c0_16 = arith.constant 0 : index
    %30 = vector.load %arg7[%c0_15, %c0_16] : memref<1x32xf32, #tpu.memory_space<vmem>>, vector<1x32xf32>
    tpu.vector_store %arg7[%c0_15, %c0_16], %29 {strides = array<i32>} : memref<1x32xf32, #tpu.memory_space<vmem>>, vector<1x32xf32>,
    return
  }
  func.func @transform_0(%arg0: i32) -> (i32, i32) {
    %c0_i32 = arith.constant 0 : i32
    %c0_i32_0 = arith.constant 0 : i32
    return %arg0, %c0_i32 : i32, i32
  }
  func.func @transform_1(%arg0: i32) -> (i32, i32) {
    %c0_i32 = arith.constant 0 : i32
    %c0_i32_0 = arith.constant 0 : i32
    return %arg0, %c0_i32 : i32, i32
  }
  func.func @transform_2(%arg0: i32) -> (i32, i32) {
    %c0_i32 = arith.constant 0 : i32
    %c0_i32_0 = arith.constant 0 : i32
    %c0_i32_1 = arith.constant 0 : i32
    return %c0_i32, %c0_i32_0 : i32, i32
  }
  func.func @transform_3(%arg0: i32) -> (i32, i32) {
    %c0_i32 = arith.constant 0 : i32
    %c0_i32_0 = arith.constant 0 : i32
    %c0_i32_1 = arith.constant 0 : i32
    return %c0_i32, %c0_i32_0 : i32, i32
  }
  func.func @transform_4(%arg0: i32) -> (i32, i32) {
    %c0_i32 = arith.constant 0 : i32
    %c0_i32_0 = arith.constant 0 : i32
    %c0_i32_1 = arith.constant 0 : i32
    return %c0_i32, %c0_i32_0 : i32, i32
  }
  func.func @transform_5(%arg0: i32) -> (i32, i32) {
    %c0_i32 = arith.constant 0 : i32
    %c0_i32_0 = arith.constant 0 : i32
    %c0_i32_1 = arith.constant 0 : i32
    return %c0_i32, %c0_i32_0 : i32, i32
  }
  func.func @transform_6(%arg0: i32) -> (i32, i32) {
    %c0_i32 = arith.constant 0 : i32
    %c0_i32_0 = arith.constant 0 : i32
    return %arg0, %c0_i32 : i32, i32
  }
}

</mosaic_0001>

<llo_original>
// kernel: tpu_custom_call.1
$region0: #{tpu_custom_call.1}
  #allocation0 [shape = 'u32[]', space=smem, size = 0x4, offset = 0x4, fixed_abs, tag = 'smem constant byte address 0x4 - core index']
  #allocation1 [shape = 'u32[72,128]{1,0:T(1,128)}', space=vmem, size = 0x9000, scoped, tag = 'internal scratch']
  %s0 = inlined_call_operand.hbm [shape: bf16[4,32], index: 0, kind: input, shape index: {}]
  %s1 = inlined_call_operand.hbm [shape: bf16[32,32], index: 1, kind: input, shape index: {}]
  %s2 = inlined_call_operand.hbm [shape: bf16[32,32], index: 2, kind: input, shape index: {}]
  %s3 = inlined_call_operand.hbm [shape: bf16[32,32], index: 3, kind: input, shape index: {}]
  %s4 = inlined_call_operand.vmem [shape: f32[1,32], index: 4, kind: input, shape index: {}]
  %s5 = inlined_call_operand.vmem [shape: f32[1,32], index: 5, kind: input, shape index: {}]
  %s6 = inlined_call_operand.hbm [shape: f32[1,32], index: 6, kind: output, shape index: {}]
  %s7 = sld [smem:[#allocation0]]
  $region50: #{tpu_custom_call.1} parent=0
    _
  %s9 = ssub.s32 1, %s7
  %s10 = scalar_select 0, %s9, %s7
  $region1: #{tpu_custom_call.1} parent=0
    #allocation2 [shape = 'u8[1024]{0}', space=vmem, size = 0x400, scoped, tag = 'input window, operand 0, single buffered']
    #allocation3 [shape = 's32[1]{0}', space=sflag, size = 0x4, scoped, tag = 'scoped memory for tpu_custom_call.1']
    #allocation4 [shape = 's32[1]{0}', space=sflag, size = 0x4, scoped, tag = 'scoped memory for tpu_custom_call.1']
    #allocation5 [shape = 'u8[8192]{0}', space=vmem, size = 0x2000, scoped, tag = 'input window, operand 1, single buffered']
    #allocation6 [shape = 's32[1]{0}', space=sflag, size = 0x4, scoped, tag = 'scoped memory for tpu_custom_call.1']
    #allocation7 [shape = 'u8[8192]{0}', space=vmem, size = 0x2000, scoped, tag = 'input window, operand 2, single buffered']
    #allocation8 [shape = 'u8[8192]{0}', space=vmem, size = 0x2000, scoped, tag = 'input window, operand 3, single buffered']
    #allocation9 [shape = 's32[1]{0}', space=sflag, size = 0x4, scoped, tag = 'scoped memory for tpu_custom_call.1']
    #allocation10 [shape = 'u8[512]{0}', space=vmem, size = 0x400, scoped, tag = 'output window, operand 0, single buffered']
    %11 = vsyncpa [#allocation3], 0
    %12 = vsyncpa [#allocation6], 0
    %13 = vsyncpa [#allocation9], 0
    %14 = vsyncpa [#allocation4], 0
    // Predicated region
    $region2: #{tpu_custom_call.1} parent=1 // pred_check
      _
    $region3: #{tpu_custom_call.1} parent=1 // pred_check_branch
      %16 = sbr.rel (0) target = $region5
    $region4: #{tpu_custom_call.1} parent=1 // pred_region
      %18 = vsyncadd [#allocation3], 0
      %s20 = sshll.u32 %s0, 4
      %s21 = int_to_ptr.hbm [resolvable:$true] %s20
      %s22 = sshll.u32 [#allocation2], 4
      %s23 = int_to_ptr.vmem [resolvable:$true] %s22
      %25 = dma.hbm_to_vmem [thread:$0]  %s21, 32, %s23, [#allocation3]
    $region5: #{tpu_custom_call.1} parent=1 // pred_fallthru
      _
    // Predicated region
    $region6: #{tpu_custom_call.1} parent=1 // pred_check
      _
    $region7: #{tpu_custom_call.1} parent=1 // pred_check_branch
      %27 = sbr.rel (0) target = $region9
    $region8: #{tpu_custom_call.1} parent=1 // pred_region
      %29 = vsyncadd [#allocation6], 0
      %s30 = sshll.u32 %s1, 4
      %s31 = int_to_ptr.hbm [resolvable:$true] %s30
      %s32 = sshll.u32 [#allocation5], 4
      %s33 = int_to_ptr.vmem [resolvable:$true] %s32
      %38 = dma.hbm_to_vmem [thread:$0]  %s31, 256, %s33, [#allocation6], 64, 64, 4
    $region9: #{tpu_custom_call.1} parent=1 // pred_fallthru
      _
    // Predicated region
    $region10: #{tpu_custom_call.1} parent=1 // pred_check
      _
    $region11: #{tpu_custom_call.1} parent=1 // pred_check_branch
      %40 = sbr.rel (0) target = $region13
    $region12: #{tpu_custom_call.1} parent=1 // pred_region
      %42 = vsyncadd [#allocation6], 0
      %s43 = sshll.u32 %s2, 4
      %s44 = int_to_ptr.hbm [resolvable:$true] %s43
      %s45 = sshll.u32 [#allocation7], 4
      %s46 = int_to_ptr.vmem [resolvable:$true] %s45
      %51 = dma.hbm_to_vmem [thread:$0]  %s44, 256, %s46, [#allocation6], 64, 64, 4
    $region13: #{tpu_custom_call.1} parent=1 // pred_fallthru
      _
    // Predicated region
    $region14: #{tpu_custom_call.1} parent=1 // pred_check
      _
    $region15: #{tpu_custom_call.1} parent=1 // pred_check_branch
      %53 = sbr.rel (0) target = $region17
    $region16: #{tpu_custom_call.1} parent=1 // pred_region
      %55 = vsyncadd [#allocation9], 0
      %s56 = sshll.u32 %s3, 4
      %s57 = int_to_ptr.hbm [resolvable:$true] %s56
      %s58 = sshll.u32 [#allocation8], 4
      %s59 = int_to_ptr.vmem [resolvable:$true] %s58
      %64 = dma.hbm_to_vmem [thread:$0]  %s57, 256, %s59, [#allocation9], 64, 64, 4
    $region17: #{tpu_custom_call.1} parent=1 // pred_fallthru
      _
    // Predicated region
    $region18: #{tpu_custom_call.1} parent=1 // pred_check
      _
    $region19: #{tpu_custom_call.1} parent=1 // pred_check_branch
      %66 = sbr.rel (0) target = $region21
    $region20: #{tpu_custom_call.1} parent=1 // pred_region
      _
    $region21: #{tpu_custom_call.1} parent=1 // pred_fallthru
      _
    // Predicated region
    $region22: #{tpu_custom_call.1} parent=1 // pred_check
      _
    $region23: #{tpu_custom_call.1} parent=1 // pred_check_branch
      %68 = sbr.rel (0) target = $region25
    $region24: #{tpu_custom_call.1} parent=1 // pred_region
      _
    $region25: #{tpu_custom_call.1} parent=1 // pred_fallthru
      _
    // Predicated region
    $region26: #{tpu_custom_call.1} parent=1 // pred_check
      _
    $region27: #{tpu_custom_call.1} parent=1 // pred_check_branch
      %70 = sbr.rel (0) target = $region29
    $region28: #{tpu_custom_call.1} parent=1 // pred_region
      %72 = dma.done [#allocation3], 32
    $region29: #{tpu_custom_call.1} parent=1 // pred_fallthru
      _
    // Predicated region
    $region30: #{tpu_custom_call.1} parent=1 // pred_check
      _
    $region31: #{tpu_custom_call.1} parent=1 // pred_check_branch
      %74 = sbr.rel (0) target = $region33
    $region32: #{tpu_custom_call.1} parent=1 // pred_region
      %76 = dma.done [#allocation6], 256
    $region33: #{tpu_custom_call.1} parent=1 // pred_fallthru
      _
    // Predicated region
    $region34: #{tpu_custom_call.1} parent=1 // pred_check
      _
    $region35: #{tpu_custom_call.1} parent=1 // pred_check_branch
      %78 = sbr.rel (0) target = $region37
    $region36: #{tpu_custom_call.1} parent=1 // pred_region
      %80 = dma.done [#allocation6], 256
    $region37: #{tpu_custom_call.1} parent=1 // pred_fallthru
      _
    // Predicated region
    $region38: #{tpu_custom_call.1} parent=1 // pred_check
      _
    $region39: #{tpu_custom_call.1} parent=1 // pred_check_branch
      %82 = sbr.rel (0) target = $region41
    $region40: #{tpu_custom_call.1} parent=1 // pred_region
      %84 = dma.done [#allocation9], 256
    $region41: #{tpu_custom_call.1} parent=1 // pred_fallthru
      _
    %v86 = vld [vmem:[#allocation2] sm:$0x3]
    %v87 = vld [vmem:[#allocation7] sm:$0xf]
    %v88 = vld [vmem:[#allocation7 + $0x4] sm:$0xf]
    %v89 = vld [vmem:[#allocation7 + $0x8] sm:$0xf]
    %v90 = vld [vmem:[#allocation7 + $0xc] sm:$0xf]
    %v91 = vld [vmem:[#allocation5] sm:$0xf]
    %v92 = vld [vmem:[#allocation5 + $0x4] sm:$0xf]
    %v93 = vld [vmem:[#allocation5 + $0x8] sm:$0xf]
    %v94 = vld [vmem:[#allocation5 + $0xc] sm:$0xf]
    %v95 = vld [vmem:[#allocation8] sm:$0xf]
    %v96 = vld [vmem:[#allocation8 + $0x4] sm:$0xf]
    %v97 = vld [vmem:[#allocation8 + $0x8] sm:$0xf]
    %v98 = vld [vmem:[#allocation8 + $0xc] sm:$0xf]
    %v103 = vunpack.c.l.b16 %v91
    %v104 = vunpack.c.l.b16 %v92
    %v105 = vunpack.c.l.b16 %v93
    %v106 = vunpack.c.l.b16 %v94
    %v107 = vpack.c.b16 %v104, %v103
    %v108 = vpack.c.b16 %v106, %v105
    %v113 = vunpack.c.l.b16 %v95
    %v114 = vunpack.c.l.b16 %v96
    %v115 = vunpack.c.l.b16 %v97
    %v116 = vunpack.c.l.b16 %v98
    %v117 = vpack.c.b16 %v114, %v113
    %v118 = vpack.c.b16 %v116, %v115
    %vm121 = vcmask 261120
    %v123 = vsel %vm121, %v107, 0
    %v126 = vsel %vm121, %v108, 0
    %128 = vmatpush.bf16.msra.mxu0 0
    %129 = vmatpush.bf16.msra.mxu0 0
    %130 = vmatpush.bf16.msra.mxu0 0
    %131 = vmatpush.bf16.msra.mxu0 0
    %132 = vmatpush.bf16.msra.mxu0 0
    %133 = vmatpush.bf16.msra.mxu0 0
    %134 = vmatpush.bf16.msra.mxu0 %v118
    %135 = vmatpush.bf16.msra.mxu0 %v117
    %136 = vmatmul.bf16.gmra.mxu0 %v123
    %v137 = vpop.f32.mrf.mxu0
    %v138 = vadd.f32 0.0, %v137
    %v139 = vpop.f32.mrf.mxu0
    %v140 = vadd.f32 0.0, %v139
    %141 = vmatmul.bf16.gmra.mxu0 %v126
    %v142 = vpop.f32.mrf.mxu0
    %v143 = vadd.f32 0.0, %v142
    %v144 = vpop.f32.mrf.mxu0
    %v145 = vadd.f32 0.0, %v144
    %146 = vdwg.mxu0
    %v147 = vld [vmem:[%s4] sm:$0x1]
    %v149 = vperm.slane %v147, 0
    %v155 = vunpack.c.l.b16 %v87
    %v156 = vunpack.c.l.b16 %v88
    %v157 = vunpack.c.l.b16 %v89
    %v158 = vunpack.c.l.b16 %v90
    %v159 = vpack.c.b16 %v156, %v155
    %v160 = vpack.c.b16 %v158, %v157
    %v164 = vsel %vm121, %v86, 0
    %166 = vmatpush.bf16.msra.mxu0 0
    %167 = vmatpush.bf16.msra.mxu0 0
    %168 = vmatpush.bf16.msra.mxu0 0
    %169 = vmatpush.bf16.msra.mxu0 0
    %170 = vmatpush.bf16.msra.mxu0 0
    %171 = vmatpush.bf16.msra.mxu0 0
    %172 = vmatpush.bf16.msra.mxu0 %v160
    %173 = vmatpush.bf16.msra.mxu0 %v159
    %174 = vmatmul.bf16.gmra.mxu0 %v164
    %v175 = vpop.f32.mrf.mxu0
    %v176 = vadd.f32 %v149, %v175
    %v177 = vpop.f32.mrf.mxu0
    %178 = vdwg.mxu0
    %v180 = vrot.slane %v176, 1
    %v181 = vrot.slane %v176, 2
    %v182 = vrot.slane %v176, 3
    %v183 = vperm.slane %v176, 0
    %v184 = vperm.slane %v180, 0
    %v185 = vperm.slane %v181, 0
    %v186 = vperm.slane %v182, 0
    %v191 = vadd.f32 %v138, %v183
    %v192 = vadd.f32 %v140, %v184
    %v193 = vadd.f32 %v143, %v185
    %v194 = vadd.f32 %v145, %v186
    %v195 = vtanh.pop %v191
    %v196 = vtanh.pop %v192
    %v197 = vtanh.pop %v193
    %v198 = vtanh.pop %v194
    %v199 = vld [vmem:[%s5] sm:$0x1]
    %v201 = vperm.slane %v199, 0
    %v203 = vmul.f32 %v195, %v201
    %v204 = vmul.f32 %v196, %v201
    %v205 = vmul.f32 %v197, %v201
    %v206 = vmul.f32 %v198, %v201
    %v207 = vsel %vm121, %v203, 0.0
    %208 = vadd.xlane.f32.xlu0 %v207
    %v209 = vpop.xlane.xlu0 %208
    %v210 = vsel %vm121, %v204, 0.0
    %211 = vadd.xlane.f32.xlu0 %v210
    %v212 = vpop.xlane.xlu0 %211
    %v213 = vsel %vm121, %v205, 0.0
    %214 = vadd.xlane.f32.xlu0 %v213
    %v215 = vpop.xlane.xlu0 %214
    %v216 = vsel %vm121, %v206, 0.0
    %217 = vadd.xlane.f32.xlu0 %v216
    %v218 = vpop.xlane.xlu0 %217
    %v223 = vlaneseq
    %v224 = vand.u32 %v223, 127
    %v225 = vperm.slane %v209, %v224
    %v226 = vperm.slane %v212, %v224
    %v227 = vperm.slane %v215, %v224
    %v228 = vperm.slane %v218, %v224
    %vm229 = vcmask 1041409
    %v230 = vsel %vm229, %v226, %v225
    %vm231 = vcmask 1042434
    %v232 = vsel %vm231, %v227, %v230
    %vm233 = vcmask 1043459
    %v234 = vsel %vm233, %v228, %v232
    %vm236 = vcmask 60416
    %v237 = vsel %vm236, %v234, -inf
    %238 = vmax.xlane.f32.xlu0 %v237
    %v239 = vpop.xlane.xlu0 %238
    %v241 = vperm.slane %v239, 0
    %v242 = vperm.slane %v239, 1
    %v243 = vperm.slane %v239, 2
    %v244 = vperm.slane %v239, 3
    %v249 = vsub.f32 %v209, %v241
    %v250 = vsub.f32 %v212, %v242
    %v251 = vsub.f32 %v215, %v243
    %v252 = vsub.f32 %v218, %v244
    %v253 = vmul.f32 %v249, 1.442695
    %v254 = vpow.pop %v253
    %v255 = vmul.f32 %v250, 1.442695
    %v256 = vpow.pop %v255
    %v257 = vmul.f32 %v251, 1.442695
    %v258 = vpow.pop %v257
    %v259 = vmul.f32 %v252, 1.442695
    %v260 = vpow.pop %v259
    %265 = vset.pattern.permute.xlu0 0
    %266 = vperm.xlu0 %265, %v254
    %v267 = vpop.permute.xlu0 %266
    %268 = vset.pattern.permute.xlu0 0
    %269 = vperm.xlu0 %268, %v256
    %v270 = vpop.permute.xlu0 %269
    %271 = vset.pattern.permute.xlu0 0
    %272 = vperm.xlu0 %271, %v258
    %v273 = vpop.permute.xlu0 %272
    %274 = vset.pattern.permute.xlu0 0
    %275 = vperm.xlu0 %274, %v260
    %v276 = vpop.permute.xlu0 %275
    %v277 = vperm.slane %v267, %v224
    %v278 = vperm.slane %v270, %v224
    %v279 = vperm.slane %v273, %v224
    %v280 = vperm.slane %v276, %v224
    %v281 = vsel %vm229, %v278, %v277
    %v282 = vsel %vm231, %v279, %v281
    %v283 = vsel %vm233, %v280, %v282
    %v285 = vsel %vm236, %v283, 0.0
    %286 = vadd.xlane.f32.xlu0 %v285
    %v287 = vpop.xlane.xlu0 %286
    %v288 = vrcp.pop %v287
    %v290 = vperm.slane %v288, 0
    %v291 = vperm.slane %v288, 1
    %v292 = vperm.slane %v288, 2
    %v293 = vperm.slane %v288, 3
    %v298 = vmul.f32 %v254, %v290
    %v299 = vmul.f32 %v256, %v291
    %v300 = vmul.f32 %v258, %v292
    %v301 = vmul.f32 %v260, %v293
    %306 = vset.pattern.permute.xlu0 0
    %307 = vperm.xlu0 %306, %v298
    %v308 = vpop.permute.xlu0 %307
    %309 = vset.pattern.permute.xlu0 0
    %310 = vperm.xlu0 %309, %v299
    %v311 = vpop.permute.xlu0 %310
    %312 = vset.pattern.permute.xlu0 0
    %313 = vperm.xlu0 %312, %v300
    %v314 = vpop.permute.xlu0 %313
    %315 = vset.pattern.permute.xlu0 0
    %316 = vperm.xlu0 %315, %v301
    %v317 = vpop.permute.xlu0 %316
    %v318 = vperm.slane %v308, %v224
    %v319 = vadd.s32 %v224, 4294967288
    %v320 = vperm.slane %v311, %v319
    %vm321 = vcmask 130112
    %v322 = vsel %vm321, %v320, %v318
    %v323 = vadd.s32 %v224, 4294967280
    %v324 = vperm.slane %v314, %v323
    %vm325 = vcmask 195712
    %v326 = vsel %vm325, %v324, %v322
    %v327 = vadd.s32 %v224, 4294967272
    %v328 = vperm.slane %v317, %v327
    %vm329 = vcmask 261312
    %v330 = vsel %vm329, %v328, %v326
    %vm332 = vcmask 253952
    %333 = vst.msk [vmem:[#allocation10] sm:$0x1] %vm332, %v330
    // Predicated region
    $region42: #{tpu_custom_call.1} parent=1 // pred_check
      _
    $region43: #{tpu_custom_call.1} parent=1 // pred_check_branch
      %335 = sbr.rel (0) target = $region45
    $region44: #{tpu_custom_call.1} parent=1 // pred_region
      %337 = vsyncadd [#allocation4], 0
      %s339 = sshll.u32 [#allocation10], 4
      %s340 = int_to_ptr.vmem [resolvable:$true] %s339
      %s341 = sshll.u32 %s6, 4
      %s342 = int_to_ptr.hbm [resolvable:$true] %s341
      %344 = dma.vmem_to_hbm [thread:$0]  %s340, 16, %s342, [#allocation4]
    $region45: #{tpu_custom_call.1} parent=1 // pred_fallthru
      _
    // Predicated region
    $region46: #{tpu_custom_call.1} parent=1 // pred_check
      _
    $region47: #{tpu_custom_call.1} parent=1 // pred_check_branch
      %346 = sbr.rel (0) target = $region49
    $region48: #{tpu_custom_call.1} parent=1 // pred_region
      %348 = dma.done [#allocation4], 16
    $region49: #{tpu_custom_call.1} parent=1 // pred_fallthru
      _
    %349 = vsyncpa [#allocation3], 1
    %350 = vsyncpa [#allocation6], 1
    %351 = vsyncpa [#allocation9], 1
    %352 = vsyncpa [#allocation4], 1

</llo_original>
